<compile_context>
chip_gen: v5e
topology: v5e:2x2
jax: 0.10.0
libtpu: 0.0.40
codegen_flags: <defaults>
</compile_context>

<pallas_src>
import functools
import math

import jax
import jax.numpy as jnp
import numpy as np
from jax.experimental import pallas as pl
from jax.experimental.pallas import tpu as pltpu


def attention_bottleneck_kernel(x_ref, pe_ref, wqkv_ref, wo_ref, o_ref, *, num_heads):
    # x_ref:    (B, S, H)   VMEM f32
    # pe_ref:   (1, S, H)   VMEM f32   (positional encoding)
    # wqkv_ref: (H, 3H)     VMEM bf16  ([Wq^T * 1/sqrt(dh) | Wk^T | Wv^T])
    # wo_ref:   (H, H)      VMEM bf16  (Wo^T)
    # o_ref:    (B, S, H)   VMEM f32
    B, S, H = x_ref.shape
    dh = H // num_heads

    # Positional encoding (dropout = identity), then bf16 for the MXU.
    xp = x_ref[...] + pe_ref[...]                                   # (B, S, H) f32
    xb = xp.astype(jnp.bfloat16).reshape(B * S, H)                  # (B*S, H)  bf16

    # Fused Q/K/V projection: one full-width MXU matmul (scale already folded into Wq).
    qkv = jnp.dot(xb, wqkv_ref[...],
                  preferred_element_type=jnp.float32)               # (B*S, 3H) f32

    # Per-head scaled scores (static unroll; num_heads is small). 32-lane static slices.
    s_list = []
    for h in range(num_heads):
        qh = qkv[:, 0 * H + h * dh: 0 * H + (h + 1) * dh]
        kh = qkv[:, 1 * H + h * dh: 1 * H + (h + 1) * dh]
        qh = qh.astype(jnp.bfloat16).reshape(B, S, dh)
        kh = kh.astype(jnp.bfloat16).reshape(B, S, dh)
        s_list.append(jnp.einsum("bid,bjd->bij", qh, kh,
                                 preferred_element_type=jnp.float32))   # (B, S, S) f32

    # softmax over dim=0 of the (B*num_heads, S, S) score tensor, i.e. jointly over every
    # (batch, head) group element — exactly F.softmax(scores, dim=0).  All stats in f32.
    m = s_list[0]
    for s in s_list[1:]:
        m = jnp.maximum(m, s)
    m = jnp.max(m, axis=0, keepdims=True)                            # (1, S, S)

    denom = None
    for h in range(num_heads):
        e = jnp.exp(s_list[h] - m)                                   # (B, S, S) f32
        s_list[h] = e                                                # drop scores: cap VMEM
        denom = e if denom is None else denom + e
    denom = jnp.sum(denom, axis=0, keepdims=True)                    # (1, S, S)
    inv = pl.reciprocal(denom, approx=True)                          # EUP, not VALU

    # Per-head weights@V, with the output projection ACCUMULATED per head
    # (== transpose_output + W_o of the PyTorch reference, without any lane-dim concat).
    wo = wo_ref[...]                                                 # (H, H) bf16
    final = jnp.zeros((B * S, H), dtype=jnp.float32)
    for h in range(num_heads):
        w = (s_list[h] * inv).astype(jnp.bfloat16)                   # (B, S, S)
        vh = qkv[:, 2 * H + h * dh: 2 * H + (h + 1) * dh]
        vh = vh.astype(jnp.bfloat16).reshape(B, S, dh)
        out_h = jnp.einsum("bij,bjd->bid", w, vh,
                           preferred_element_type=jnp.float32)       # (B, S, dh) f32
        out_h = out_h.astype(jnp.bfloat16).reshape(B * S, dh)
        final = final + jnp.dot(out_h, wo[h * dh:(h + 1) * dh, :],
                                preferred_element_type=jnp.float32)  # (B*S, H) f32

    # Lane-dense 128-wide store.
    o_ref[...] = final.reshape(B, S, H)


def make_positional_encoding(seq_len, num_hiddens):
    """Matches torch PositionalEncoding.P[:, :seq_len, :] (interleaved sin/cos)."""
    pos = jnp.arange(seq_len, dtype=jnp.float32).reshape(-1, 1)
    div = jnp.power(10000.0,
                    jnp.arange(0, num_hiddens, 2, dtype=jnp.float32) / num_hiddens)
    ang = pos / div                                                  # (S, H/2)
    pe = jnp.zeros((seq_len, num_hiddens), dtype=jnp.float32)
    pe = pe.at[:, 0::2].set(jnp.sin(ang))
    pe = pe.at[:, 1::2].set(jnp.cos(ang))
    return pe


def attention_bottleneck(x, Wq, Wk, Wv, Wo, num_heads):
    """x: (B, S, H); Wq/Wk/Wv/Wo: (H, H) PyTorch nn.Linear weights (bias=False)."""
    B, S, H = x.shape
    assert H % num_heads == 0
    dh = H // num_heads
    scale = 1.0 / math.sqrt(dh)

    pe = make_positional_encoding(S, H).reshape(1, S, H)
    # One-time weight prep: y = x @ W^T for nn.Linear; fold 1/sqrt(dh) into Wq; bf16 for MXU.
    wqkv = jnp.concatenate([Wq.T * scale, Wk.T, Wv.T], axis=1).astype(jnp.bfloat16)  # (H,3H)
    wo_t = Wo.T.astype(jnp.bfloat16)                                                  # (H,H)

    flops = (2 * B * S * H * 3 * H                 # fused QKV projection
             + 4 * B * num_heads * S * S * dh      # scores + weights@V
             + 2 * B * S * H * H)                  # output projection
    bytes_accessed = (4 * (x.size + pe.size + B * S * H)   # f32 in/out
                      + 2 * (wqkv.size + wo_t.size))       # bf16 weights
    cost = pl.CostEstimate(flops=int(flops),
                           transcendentals=int(B * num_heads * S * S),
                           bytes_accessed=int(bytes_accessed))

    kernel = functools.partial(attention_bottleneck_kernel, num_heads=num_heads)
    return pl.pallas_call(
        kernel,
        out_shape=jax.ShapeDtypeStruct((B, S, H), jnp.float32),
        in_specs=[
            pl.BlockSpec(memory_space=pltpu.MemorySpace.VMEM),   # x (f32)
            pl.BlockSpec(memory_space=pltpu.MemorySpace.VMEM),   # positional encoding (f32)
            pl.BlockSpec(memory_space=pltpu.MemorySpace.VMEM),   # fused [Wq^T*s|Wk^T|Wv^T] bf16
            pl.BlockSpec(memory_space=pltpu.MemorySpace.VMEM),   # Wo^T bf16
        ],
        out_specs=pl.BlockSpec(memory_space=pltpu.MemorySpace.VMEM),
        cost_estimate=cost,
    )(x.astype(jnp.float32), pe, wqkv, wo_t)


def _reference(x, Wq, Wk, Wv, Wo, num_heads):
    """Pure-JAX replica of the PyTorch forward (eval-mode dropout), f32, high precision."""
    B, S, H = x.shape
    hp = jax.lax.Precision.HIGHEST
    pe = make_positional_encoding(S, H)
    xp = x + pe[None]

    def proj(X, W):  # nn.Linear(bias=False): X @ W^T
        return jnp.einsum("bsh,oh->bso", X, W, precision=hp)

    def t_qkv(X):    # transpose_qkv
        X = X.reshape(B, S, num_heads, -1)
        X = jnp.transpose(X, (0, 2, 1, 3))
        return X.reshape(B * num_heads, S, -1)

    qh, kh, vh = t_qkv(proj(xp, Wq)), t_qkv(proj(xp, Wk)), t_qkv(proj(xp, Wv))
    d = qh.shape[-1]
    scores = jnp.einsum("gid,gjd->gij", qh, kh, precision=hp) / math.sqrt(d)
    w = jax.nn.softmax(scores, axis=0)          # NB: dim=0, as in the PyTorch code
    out = jnp.einsum("gij,gjd->gid", w, vh, precision=hp)
    out = out.reshape(B, num_heads, S, d)       # transpose_output
    out = jnp.transpose(out, (0, 2, 1, 3)).reshape(B, S, H)
    return jnp.einsum("bsh,oh->bso", out, Wo, precision=hp)


if __name__ == "__main__":
    B, S, H, NUM_HEADS = 2, 8, 128, 4

    key = jax.random.PRNGKey(0)
    kx, kq, kk, kv, ko = jax.random.split(key, 5)
    x = jax.random.normal(kx, (B, S, H), dtype=jnp.float32)
    bound = 1.0 / np.sqrt(H)  # nn.Linear default init range
    Wq = jax.random.uniform(kq, (H, H), minval=-bound, maxval=bound, dtype=jnp.float32)
    Wk = jax.random.uniform(kk, (H, H), minval=-bound, maxval=bound, dtype=jnp.float32)
    Wv = jax.random.uniform(kv, (H, H), minval=-bound, maxval=bound, dtype=jnp.float32)
    Wo = jax.random.uniform(ko, (H, H), minval=-bound, maxval=bound, dtype=jnp.float32)

    y = attention_bottleneck(x, Wq, Wk, Wv, Wo, NUM_HEADS)
    jax.block_until_ready(y)

    y_ref = _reference(x, Wq, Wk, Wv, Wo, NUM_HEADS)
    # bf16 MXU operands + approx reciprocal in the kernel vs. an f32 HIGHEST reference:
    # tolerance relaxed accordingly (observed error is well inside this).
    np.testing.assert_allclose(np.asarray(y), np.asarray(y_ref), rtol=2e-2, atol=2e-2)

    print("KERNEL_OK")
</pallas_src>

<mosaic_0001>
module attributes {stable_mosaic.version = 11 : i64} {
  func.func @attention_bottleneck_kernel(%arg0: memref<2x8x128xf32, #tpu.memory_space<vmem>>, %arg1: memref<1x8x128xf32, #tpu.memory_space<vmem>>, %arg2: memref<128x384xbf16, #tpu.memory_space<vmem>>, %arg3: memref<128x128xbf16, #tpu.memory_space<vmem>>, %arg4: memref<2x8x128xf32, #tpu.memory_space<vmem>>) attributes {dimension_semantics = [], scalar_prefetch = 0 : i64, scratch_operands = 0 : i64, tpu.core_type = #tpu.core_type<tc>} {
    %c0 = arith.constant 0 : index
    %c0_0 = arith.constant 0 : index
    %c0_1 = arith.constant 0 : index
    %0 = vector.load %arg0[%c0, %c0_0, %c0_1] : memref<2x8x128xf32, #tpu.memory_space<vmem>>, vector<2x8x128xf32>
    %c0_2 = arith.constant 0 : index
    %c0_3 = arith.constant 0 : index
    %c0_4 = arith.constant 0 : index
    %1 = vector.load %arg1[%c0_2, %c0_3, %c0_4] : memref<1x8x128xf32, #tpu.memory_space<vmem>>, vector<1x8x128xf32>
    %2 = vector.broadcast %1 : vector<1x8x128xf32> to vector<2x8x128xf32>
    %3 = arith.addf %0, %2 : vector<2x8x128xf32>
    %4 = arith.truncf %3 : vector<2x8x128xf32> to vector<2x8x128xbf16>
    %5 = vector.shape_cast %4 : vector<2x8x128xbf16> to vector<16x128xbf16>
    %c0_5 = arith.constant 0 : index
    %c0_6 = arith.constant 0 : index
    %6 = vector.load %arg2[%c0_5, %c0_6] : memref<128x384xbf16, #tpu.memory_space<vmem>>, vector<128x384xbf16>
    %cst = arith.constant dense<0.000000e+00> : vector<16x384xf32>
    %7 = tpu.matmul %5, %6, %cst {dimension_numbers = #tpu.dot_dimension_numbers<[1], [0], [0], [1], [0, 0, 1, 1], [], []>} : vector<16x128xbf16>, vector<128x384xbf16>, vector<16x384xf32> -> vector<16x384xf32>
    %8 = vector.extract_strided_slice %7 {offsets = [0, 0], sizes = [16, 32], strides = [1, 1]} : vector<16x384xf32> to vector<16x32xf32>
    %9 = vector.extract_strided_slice %7 {offsets = [0, 128], sizes = [16, 32], strides = [1, 1]} : vector<16x384xf32> to vector<16x32xf32>
    %10 = arith.truncf %8 : vector<16x32xf32> to vector<16x32xbf16>
    %11 = vector.shape_cast %10 : vector<16x32xbf16> to vector<2x8x32xbf16>
    %12 = arith.truncf %9 : vector<16x32xf32> to vector<16x32xbf16>
    %13 = vector.shape_cast %12 : vector<16x32xbf16> to vector<2x8x32xbf16>
    "tpu.trace_start"() <{level = 10 : i32, message = "bid,bjd->bij"}> : () -> ()
    %cst_7 = arith.constant dense<0.000000e+00> : vector<2x8x8xf32>
    %14 = tpu.matmul %11, %13, %cst_7 {dimension_numbers = #tpu.dot_dimension_numbers<[2], [2], [1], [1], [0, 0, 0, 1, 1, 1], [0], [0]>} : vector<2x8x32xbf16>, vector<2x8x32xbf16>, vector<2x8x8xf32> -> vector<2x8x8xf32>
    "tpu.trace_stop"() : () -> ()
    %15 = vector.extract_strided_slice %7 {offsets = [0, 32], sizes = [16, 32], strides = [1, 1]} : vector<16x384xf32> to vector<16x32xf32>
    %16 = vector.extract_strided_slice %7 {offsets = [0, 160], sizes = [16, 32], strides = [1, 1]} : vector<16x384xf32> to vector<16x32xf32>
    %17 = arith.truncf %15 : vector<16x32xf32> to vector<16x32xbf16>
    %18 = vector.shape_cast %17 : vector<16x32xbf16> to vector<2x8x32xbf16>
    %19 = arith.truncf %16 : vector<16x32xf32> to vector<16x32xbf16>
    %20 = vector.shape_cast %19 : vector<16x32xbf16> to vector<2x8x32xbf16>
    "tpu.trace_start"() <{level = 10 : i32, message = "bid,bjd->bij"}> : () -> ()
    %cst_8 = arith.constant dense<0.000000e+00> : vector<2x8x8xf32>
    %21 = tpu.matmul %18, %20, %cst_8 {dimension_numbers = #tpu.dot_dimension_numbers<[2], [2], [1], [1], [0, 0, 0, 1, 1, 1], [0], [0]>} : vector<2x8x32xbf16>, vector<2x8x32xbf16>, vector<2x8x8xf32> -> vector<2x8x8xf32>
    "tpu.trace_stop"() : () -> ()
    %22 = vector.extract_strided_slice %7 {offsets = [0, 64], sizes = [16, 32], strides = [1, 1]} : vector<16x384xf32> to vector<16x32xf32>
    %23 = vector.extract_strided_slice %7 {offsets = [0, 192], sizes = [16, 32], strides = [1, 1]} : vector<16x384xf32> to vector<16x32xf32>
    %24 = arith.truncf %22 : vector<16x32xf32> to vector<16x32xbf16>
    %25 = vector.shape_cast %24 : vector<16x32xbf16> to vector<2x8x32xbf16>
    %26 = arith.truncf %23 : vector<16x32xf32> to vector<16x32xbf16>
    %27 = vector.shape_cast %26 : vector<16x32xbf16> to vector<2x8x32xbf16>
    "tpu.trace_start"() <{level = 10 : i32, message = "bid,bjd->bij"}> : () -> ()
    %cst_9 = arith.constant dense<0.000000e+00> : vector<2x8x8xf32>
    %28 = tpu.matmul %25, %27, %cst_9 {dimension_numbers = #tpu.dot_dimension_numbers<[2], [2], [1], [1], [0, 0, 0, 1, 1, 1], [0], [0]>} : vector<2x8x32xbf16>, vector<2x8x32xbf16>, vector<2x8x8xf32> -> vector<2x8x8xf32>
    "tpu.trace_stop"() : () -> ()
    %29 = vector.extract_strided_slice %7 {offsets = [0, 96], sizes = [16, 32], strides = [1, 1]} : vector<16x384xf32> to vector<16x32xf32>
    %30 = vector.extract_strided_slice %7 {offsets = [0, 224], sizes = [16, 32], strides = [1, 1]} : vector<16x384xf32> to vector<16x32xf32>
    %31 = arith.truncf %29 : vector<16x32xf32> to vector<16x32xbf16>
    %32 = vector.shape_cast %31 : vector<16x32xbf16> to vector<2x8x32xbf16>
    %33 = arith.truncf %30 : vector<16x32xf32> to vector<16x32xbf16>
    %34 = vector.shape_cast %33 : vector<16x32xbf16> to vector<2x8x32xbf16>
    "tpu.trace_start"() <{level = 10 : i32, message = "bid,bjd->bij"}> : () -> ()
    %cst_10 = arith.constant dense<0.000000e+00> : vector<2x8x8xf32>
    %35 = tpu.matmul %32, %34, %cst_10 {dimension_numbers = #tpu.dot_dimension_numbers<[2], [2], [1], [1], [0, 0, 0, 1, 1, 1], [0], [0]>} : vector<2x8x32xbf16>, vector<2x8x32xbf16>, vector<2x8x8xf32> -> vector<2x8x8xf32>
    "tpu.trace_stop"() : () -> ()
    %36 = arith.maximumf %14, %21 : vector<2x8x8xf32>
    %37 = arith.maximumf %36, %28 : vector<2x8x8xf32>
    %38 = arith.maximumf %37, %35 : vector<2x8x8xf32>
    %cst_11 = arith.constant dense<0xFF800000> : vector<8x8xf32>
    %39 = vector.multi_reduction <maximumf>, %38, %cst_11 [0] : vector<2x8x8xf32> to vector<8x8xf32>
    %40 = vector.shape_cast %39 : vector<8x8xf32> to vector<1x8x8xf32>
    %41 = vector.broadcast %40 : vector<1x8x8xf32> to vector<2x8x8xf32>
    %42 = arith.subf %14, %41 : vector<2x8x8xf32>
    %43 = math.exp %42 : vector<2x8x8xf32>
    %44 = vector.broadcast %40 : vector<1x8x8xf32> to vector<2x8x8xf32>
    %45 = arith.subf %21, %44 : vector<2x8x8xf32>
    %46 = math.exp %45 : vector<2x8x8xf32>
    %47 = arith.addf %43, %46 : vector<2x8x8xf32>
    %48 = vector.broadcast %40 : vector<1x8x8xf32> to vector<2x8x8xf32>
    %49 = arith.subf %28, %48 : vector<2x8x8xf32>
    %50 = math.exp %49 : vector<2x8x8xf32>
    %51 = arith.addf %47, %50 : vector<2x8x8xf32>
    %52 = vector.broadcast %40 : vector<1x8x8xf32> to vector<2x8x8xf32>
    %53 = arith.subf %35, %52 : vector<2x8x8xf32>
    %54 = math.exp %53 : vector<2x8x8xf32>
    %55 = arith.addf %51, %54 : vector<2x8x8xf32>
    %cst_12 = arith.constant dense<0.000000e+00> : vector<8x8xf32>
    %56 = vector.multi_reduction <add>, %55, %cst_12 [0] : vector<2x8x8xf32> to vector<8x8xf32>
    %57 = vector.shape_cast %56 : vector<8x8xf32> to vector<1x8x8xf32>
    %58 = tpu.reciprocal %57 {approx = true} : vector<1x8x8xf32> -> vector<1x8x8xf32>
    %c0_13 = arith.constant 0 : index
    %c0_14 = arith.constant 0 : index
    %59 = vector.load %arg3[%c0_13, %c0_14] : memref<128x128xbf16, #tpu.memory_space<vmem>>, vector<128x128xbf16>
    %cst_15 = arith.constant 0.000000e+00 : f32
    %60 = vector.broadcast %cst_15 : f32 to vector<16x128xf32>
    %61 = vector.broadcast %58 : vector<1x8x8xf32> to vector<2x8x8xf32>
    %62 = arith.mulf %43, %61 : vector<2x8x8xf32>
    %63 = arith.truncf %62 : vector<2x8x8xf32> to vector<2x8x8xbf16>
    %64 = vector.extract_strided_slice %7 {offsets = [0, 256], sizes = [16, 32], strides = [1, 1]} : vector<16x384xf32> to vector<16x32xf32>
    %65 = arith.truncf %64 : vector<16x32xf32> to vector<16x32xbf16>
    %66 = vector.shape_cast %65 : vector<16x32xbf16> to vector<2x8x32xbf16>
    "tpu.trace_start"() <{level = 10 : i32, message = "bij,bjd->bid"}> : () -> ()
    %cst_16 = arith.constant dense<0.000000e+00> : vector<2x8x32xf32>
    %67 = tpu.matmul %63, %66, %cst_16 {dimension_numbers = #tpu.dot_dimension_numbers<[2], [1], [1], [2], [0, 0, 0, 1, 1, 2], [0], [0]>} : vector<2x8x8xbf16>, vector<2x8x32xbf16>, vector<2x8x32xf32> -> vector<2x8x32xf32>
    "tpu.trace_stop"() : () -> ()
    %68 = arith.truncf %67 : vector<2x8x32xf32> to vector<2x8x32xbf16>
    %69 = vector.shape_cast %68 : vector<2x8x32xbf16> to vector<16x32xbf16>
    %70 = vector.extract_strided_slice %59 {offsets = [0, 0], sizes = [32, 128], strides = [1, 1]} : vector<128x128xbf16> to vector<32x128xbf16>
    %cst_17 = arith.constant dense<0.000000e+00> : vector<16x128xf32>
    %71 = tpu.matmul %69, %70, %cst_17 {dimension_numbers = #tpu.dot_dimension_numbers<[1], [0], [0], [1], [0, 0, 1, 1], [], []>} : vector<16x32xbf16>, vector<32x128xbf16>, vector<16x128xf32> -> vector<16x128xf32>
    %72 = arith.addf %60, %71 : vector<16x128xf32>
    %73 = vector.broadcast %58 : vector<1x8x8xf32> to vector<2x8x8xf32>
    %74 = arith.mulf %46, %73 : vector<2x8x8xf32>
    %75 = arith.truncf %74 : vector<2x8x8xf32> to vector<2x8x8xbf16>
    %76 = vector.extract_strided_slice %7 {offsets = [0, 288], sizes = [16, 32], strides = [1, 1]} : vector<16x384xf32> to vector<16x32xf32>
    %77 = arith.truncf %76 : vector<16x32xf32> to vector<16x32xbf16>
    %78 = vector.shape_cast %77 : vector<16x32xbf16> to vector<2x8x32xbf16>
    "tpu.trace_start"() <{level = 10 : i32, message = "bij,bjd->bid"}> : () -> ()
    %cst_18 = arith.constant dense<0.000000e+00> : vector<2x8x32xf32>
    %79 = tpu.matmul %75, %78, %cst_18 {dimension_numbers = #tpu.dot_dimension_numbers<[2], [1], [1], [2], [0, 0, 0, 1, 1, 2], [0], [0]>} : vector<2x8x8xbf16>, vector<2x8x32xbf16>, vector<2x8x32xf32> -> vector<2x8x32xf32>
    "tpu.trace_stop"() : () -> ()
    %80 = arith.truncf %79 : vector<2x8x32xf32> to vector<2x8x32xbf16>
    %81 = vector.shape_cast %80 : vector<2x8x32xbf16> to vector<16x32xbf16>
    %82 = vector.extract_strided_slice %59 {offsets = [32, 0], sizes = [32, 128], strides = [1, 1]} : vector<128x128xbf16> to vector<32x128xbf16>
    %cst_19 = arith.constant dense<0.000000e+00> : vector<16x128xf32>
    %83 = tpu.matmul %81, %82, %cst_19 {dimension_numbers = #tpu.dot_dimension_numbers<[1], [0], [0], [1], [0, 0, 1, 1], [], []>} : vector<16x32xbf16>, vector<32x128xbf16>, vector<16x128xf32> -> vector<16x128xf32>
    %84 = arith.addf %72, %83 : vector<16x128xf32>
    %85 = vector.broadcast %58 : vector<1x8x8xf32> to vector<2x8x8xf32>
    %86 = arith.mulf %50, %85 : vector<2x8x8xf32>
    %87 = arith.truncf %86 : vector<2x8x8xf32> to vector<2x8x8xbf16>
    %88 = vector.extract_strided_slice %7 {offsets = [0, 320], sizes = [16, 32], strides = [1, 1]} : vector<16x384xf32> to vector<16x32xf32>
    %89 = arith.truncf %88 : vector<16x32xf32> to vector<16x32xbf16>
    %90 = vector.shape_cast %89 : vector<16x32xbf16> to vector<2x8x32xbf16>
    "tpu.trace_start"() <{level = 10 : i32, message = "bij,bjd->bid"}> : () -> ()
    %cst_20 = arith.constant dense<0.000000e+00> : vector<2x8x32xf32>
    %91 = tpu.matmul %87, %90, %cst_20 {dimension_numbers = #tpu.dot_dimension_numbers<[2], [1], [1], [2], [0, 0, 0, 1, 1, 2], [0], [0]>} : vector<2x8x8xbf16>, vector<2x8x32xbf16>, vector<2x8x32xf32> -> vector<2x8x32xf32>
    "tpu.trace_stop"() : () -> ()
    %92 = arith.truncf %91 : vector<2x8x32xf32> to vector<2x8x32xbf16>
    %93 = vector.shape_cast %92 : vector<2x8x32xbf16> to vector<16x32xbf16>
    %94 = vector.extract_strided_slice %59 {offsets = [64, 0], sizes = [32, 128], strides = [1, 1]} : vector<128x128xbf16> to vector<32x128xbf16>
    %cst_21 = arith.constant dense<0.000000e+00> : vector<16x128xf32>
    %95 = tpu.matmul %93, %94, %cst_21 {dimension_numbers = #tpu.dot_dimension_numbers<[1], [0], [0], [1], [0, 0, 1, 1], [], []>} : vector<16x32xbf16>, vector<32x128xbf16>, vector<16x128xf32> -> vector<16x128xf32>
    %96 = arith.addf %84, %95 : vector<16x128xf32>
    %97 = vector.broadcast %58 : vector<1x8x8xf32> to vector<2x8x8xf32>
    %98 = arith.mulf %54, %97 : vector<2x8x8xf32>
    %99 = arith.truncf %98 : vector<2x8x8xf32> to vector<2x8x8xbf16>
    %100 = vector.extract_strided_slice %7 {offsets = [0, 352], sizes = [16, 32], strides = [1, 1]} : vector<16x384xf32> to vector<16x32xf32>
    %101 = arith.truncf %100 : vector<16x32xf32> to vector<16x32xbf16>
    %102 = vector.shape_cast %101 : vector<16x32xbf16> to vector<2x8x32xbf16>
    "tpu.trace_start"() <{level = 10 : i32, message = "bij,bjd->bid"}> : () -> ()
    %cst_22 = arith.constant dense<0.000000e+00> : vector<2x8x32xf32>
    %103 = tpu.matmul %99, %102, %cst_22 {dimension_numbers = #tpu.dot_dimension_numbers<[2], [1], [1], [2], [0, 0, 0, 1, 1, 2], [0], [0]>} : vector<2x8x8xbf16>, vector<2x8x32xbf16>, vector<2x8x32xf32> -> vector<2x8x32xf32>
    "tpu.trace_stop"() : () -> ()
    %104 = arith.truncf %103 : vector<2x8x32xf32> to vector<2x8x32xbf16>
    %105 = vector.shape_cast %104 : vector<2x8x32xbf16> to vector<16x32xbf16>
    %106 = vector.extract_strided_slice %59 {offsets = [96, 0], sizes = [32, 128], strides = [1, 1]} : vector<128x128xbf16> to vector<32x128xbf16>
    %cst_23 = arith.constant dense<0.000000e+00> : vector<16x128xf32>
    %107 = tpu.matmul %105, %106, %cst_23 {dimension_numbers = #tpu.dot_dimension_numbers<[1], [0], [0], [1], [0, 0, 1, 1], [], []>} : vector<16x32xbf16>, vector<32x128xbf16>, vector<16x128xf32> -> vector<16x128xf32>
    %108 = arith.addf %96, %107 : vector<16x128xf32>
    %109 = vector.shape_cast %108 : vector<16x128xf32> to vector<2x8x128xf32>
    %c0_24 = arith.constant 0 : index
    %c0_25 = arith.constant 0 : index
    %c0_26 = arith.constant 0 : index
    %110 = vector.load %arg4[%c0_24, %c0_25, %c0_26] : memref<2x8x128xf32, #tpu.memory_space<vmem>>, vector<2x8x128xf32>
    tpu.vector_store %arg4[%c0_24, %c0_25, %c0_26], %109 {strides = array<i32>} : memref<2x8x128xf32, #tpu.memory_space<vmem>>, vector<2x8x128xf32>,
    return
  }
}

</mosaic_0001>

<llo_original>
// kernel: tpu_custom_call.1
$region0: #{tpu_custom_call.1}
  #allocation0 [shape = 'u32[]', space=smem, size = 0x4, offset = 0x4, fixed_abs, tag = 'smem constant byte address 0x4 - core index']
  #allocation1 [shape = 'u32[72,128]{1,0:T(1,128)}', space=vmem, size = 0x9000, scoped, tag = 'internal scratch']
  %s0 = inlined_call_operand.hbm [shape: f32[2,8,128], index: 0, kind: input, shape index: {}]
  %s1 = inlined_call_operand.hbm [shape: f32[1,8,128], index: 1, kind: input, shape index: {}]
  %s2 = inlined_call_operand.hbm [shape: bf16[128,384], index: 2, kind: input, shape index: {}]
  %s3 = inlined_call_operand.hbm [shape: bf16[128,128], index: 3, kind: input, shape index: {}]
  %s4 = inlined_call_operand.hbm [shape: f32[2,8,128], index: 4, kind: output, shape index: {}]
  %s5 = sld [smem:[#allocation0]]
  $region42: #{tpu_custom_call.1} parent=0
    _
  %s7 = ssub.s32 1, %s5
  %s8 = scalar_select 0, %s7, %s5
  $region1: #{tpu_custom_call.1} parent=0
    #allocation2 [shape = 'u8[8192]{0}', space=vmem, size = 0x2000, scoped, tag = 'input window, operand 0, single buffered']
    #allocation3 [shape = 's32[1]{0}', space=sflag, size = 0x4, scoped, tag = 'scoped memory for tpu_custom_call.1']
    #allocation4 [shape = 's32[1]{0}', space=sflag, size = 0x4, scoped, tag = 'scoped memory for tpu_custom_call.1']
    #allocation5 [shape = 'u8[4096]{0}', space=vmem, size = 0x1000, scoped, tag = 'input window, operand 1, single buffered']
    #allocation6 [shape = 's32[1]{0}', space=sflag, size = 0x4, scoped, tag = 'scoped memory for tpu_custom_call.1']
    #allocation7 [shape = 'u8[98304]{0}', space=vmem, size = 0x18000, scoped, tag = 'input window, operand 2, single buffered']
    #allocation8 [shape = 'u8[32768]{0}', space=vmem, size = 0x8000, scoped, tag = 'input window, operand 3, single buffered']
    #allocation9 [shape = 's32[1]{0}', space=sflag, size = 0x4, scoped, tag = 'scoped memory for tpu_custom_call.1']
    #allocation10 [shape = 'u8[8192]{0}', space=vmem, size = 0x2000, scoped, tag = 'output window, operand 0, single buffered']
    %9 = vsyncpa [#allocation3], 0
    %10 = vsyncpa [#allocation6], 0
    %11 = vsyncpa [#allocation9], 0
    %12 = vsyncpa [#allocation4], 0
    // Predicated region
    $region2: #{tpu_custom_call.1} parent=1 // pred_check
      _
    $region3: #{tpu_custom_call.1} parent=1 // pred_check_branch
      %14 = sbr.rel (0) target = $region5
    $region4: #{tpu_custom_call.1} parent=1 // pred_region
      %16 = vsyncadd [#allocation3], 0
      %s17 = sshll.u32 %s0, 4
      %s18 = int_to_ptr.hbm [resolvable:$true] %s17
      %s19 = sshll.u32 [#allocation2], 4
      %s20 = int_to_ptr.vmem [resolvable:$true] %s19
      %25 = dma.hbm_to_vmem [thread:$0]  %s18, 256, %s20, [#allocation3], 128, 128, 8
    $region5: #{tpu_custom_call.1} parent=1 // pred_fallthru
      _
    // Predicated region
    $region6: #{tpu_custom_call.1} parent=1 // pred_check
      _
    $region7: #{tpu_custom_call.1} parent=1 // pred_check_branch
      %27 = sbr.rel (0) target = $region9
    $region8: #{tpu_custom_call.1} parent=1 // pred_region
      %29 = vsyncadd [#allocation6], 0
      %s31 = sshll.u32 %s1, 4
      %s32 = int_to_ptr.hbm [resolvable:$true] %s31
      %s33 = sshll.u32 [#allocation5], 4
      %s34 = int_to_ptr.vmem [resolvable:$true] %s33
      %36 = dma.hbm_to_vmem [thread:$0]  %s32, 128, %s34, [#allocation6]
    $region9: #{tpu_custom_call.1} parent=1 // pred_fallthru
      _
    // Predicated region
    $region10: #{tpu_custom_call.1} parent=1 // pred_check
      _
    $region11: #{tpu_custom_call.1} parent=1 // pred_check_branch
      %38 = sbr.rel (0) target = $region13
    $region12: #{tpu_custom_call.1} parent=1 // pred_region
      %40 = vsyncadd [#allocation6], 0
      %s41 = sshll.u32 %s2, 4
      %s42 = int_to_ptr.hbm [resolvable:$true] %s41
      %s43 = sshll.u32 [#allocation7], 4
      %s44 = int_to_ptr.vmem [resolvable:$true] %s43
      %49 = dma.hbm_to_vmem [thread:$0]  %s42, 3072, %s44, [#allocation6], 192, 192, 12
    $region13: #{tpu_custom_call.1} parent=1 // pred_fallthru
      _
    // Predicated region
    $region14: #{tpu_custom_call.1} parent=1 // pred_check
      _
    $region15: #{tpu_custom_call.1} parent=1 // pred_check_branch
      %51 = sbr.rel (0) target = $region17
    $region16: #{tpu_custom_call.1} parent=1 // pred_region
      %53 = vsyncadd [#allocation9], 0
      %s54 = sshll.u32 %s3, 4
      %s55 = int_to_ptr.hbm [resolvable:$true] %s54
      %s56 = sshll.u32 [#allocation8], 4
      %s57 = int_to_ptr.vmem [resolvable:$true] %s56
      %62 = dma.hbm_to_vmem [thread:$0]  %s55, 1024, %s57, [#allocation9], 64, 64, 4
    $region17: #{tpu_custom_call.1} parent=1 // pred_fallthru
      _
    // Predicated region
    $region18: #{tpu_custom_call.1} parent=1 // pred_check
      _
    $region19: #{tpu_custom_call.1} parent=1 // pred_check_branch
      %64 = sbr.rel (0) target = $region21
    $region20: #{tpu_custom_call.1} parent=1 // pred_region
      %66 = dma.done [#allocation3], 256
    $region21: #{tpu_custom_call.1} parent=1 // pred_fallthru
      _
    // Predicated region
    $region22: #{tpu_custom_call.1} parent=1 // pred_check
      _
    $region23: #{tpu_custom_call.1} parent=1 // pred_check_branch
      %68 = sbr.rel (0) target = $region25
    $region24: #{tpu_custom_call.1} parent=1 // pred_region
      %70 = dma.done [#allocation6], 128
    $region25: #{tpu_custom_call.1} parent=1 // pred_fallthru
      _
    // Predicated region
    $region26: #{tpu_custom_call.1} parent=1 // pred_check
      _
    $region27: #{tpu_custom_call.1} parent=1 // pred_check_branch
      %72 = sbr.rel (0) target = $region29
    $region28: #{tpu_custom_call.1} parent=1 // pred_region
      %74 = dma.done [#allocation6], 3072
    $region29: #{tpu_custom_call.1} parent=1 // pred_fallthru
      _
    // Predicated region
    $region30: #{tpu_custom_call.1} parent=1 // pred_check
      _
    $region31: #{tpu_custom_call.1} parent=1 // pred_check_branch
      %76 = sbr.rel (0) target = $region33
    $region32: #{tpu_custom_call.1} parent=1 // pred_region
      %78 = dma.done [#allocation9], 1024
    $region33: #{tpu_custom_call.1} parent=1 // pred_fallthru
      _
    %v80 = vld [vmem:[#allocation2] sm:$0xff]
    %v81 = vld [vmem:[#allocation2 + $0x8] sm:$0xff]
    %v82 = vld [vmem:[#allocation5] sm:$0xff]
    %v83 = vadd.f32 %v80, %v82
    %v84 = vadd.f32 %v81, %v82
    %v85 = vpack.c.bf16 %v83, %v83
    %v86 = vpack.c.bf16 %v84, %v84
    %v87 = vld [vmem:[#allocation7] sm:$0xff]
    %v88 = vld [vmem:[#allocation7 + $0x8] sm:$0xf]
    %v89 = vld [vmem:[#allocation7 + $0xc] sm:$0xff]
    %v90 = vld [vmem:[#allocation7 + $0x14] sm:$0xf]
    %v91 = vld [vmem:[#allocation7 + $0x18] sm:$0xff]
    %v92 = vld [vmem:[#allocation7 + $0x20] sm:$0xf]
    %v93 = vld [vmem:[#allocation7 + $0x24] sm:$0xff]
    %v94 = vld [vmem:[#allocation7 + $0x2c] sm:$0xf]
    %v95 = vld [vmem:[#allocation7 + $0x30] sm:$0xff]
    %v96 = vld [vmem:[#allocation7 + $0x38] sm:$0xf]
    %v97 = vld [vmem:[#allocation7 + $0x3c] sm:$0xff]
    %v98 = vld [vmem:[#allocation7 + $0x44] sm:$0xf]
    %v99 = vld [vmem:[#allocation7 + $0x48] sm:$0xff]
    %v100 = vld [vmem:[#allocation7 + $0x50] sm:$0xf]
    %v101 = vld [vmem:[#allocation7 + $0x54] sm:$0xff]
    %v102 = vld [vmem:[#allocation7 + $0x5c] sm:$0xf]
    %v103 = vld [vmem:[#allocation7 + $0x60] sm:$0xff]
    %v104 = vld [vmem:[#allocation7 + $0x68] sm:$0xf]
    %v105 = vld [vmem:[#allocation7 + $0x6c] sm:$0xff]
    %v106 = vld [vmem:[#allocation7 + $0x74] sm:$0xf]
    %v107 = vld [vmem:[#allocation7 + $0x78] sm:$0xff]
    %v108 = vld [vmem:[#allocation7 + $0x80] sm:$0xf]
    %v109 = vld [vmem:[#allocation7 + $0x84] sm:$0xff]
    %v110 = vld [vmem:[#allocation7 + $0x8c] sm:$0xf]
    %v111 = vld [vmem:[#allocation7 + $0x90] sm:$0xff]
    %v112 = vld [vmem:[#allocation7 + $0x98] sm:$0xf]
    %v113 = vld [vmem:[#allocation7 + $0x9c] sm:$0xff]
    %v114 = vld [vmem:[#allocation7 + $0xa4] sm:$0xf]
    %v115 = vld [vmem:[#allocation7 + $0xa8] sm:$0xff]
    %v116 = vld [vmem:[#allocation7 + $0xb0] sm:$0xf]
    %v117 = vld [vmem:[#allocation7 + $0xb4] sm:$0xff]
    %v118 = vld [vmem:[#allocation7 + $0xbc] sm:$0xf]
    %v121 = vunpack.c.l.b16 %v85
    %v122 = vunpack.c.l.b16 %v86
    %v123 = vpack.c.b16 %v122, %v121
    %v157 = vunpack.c.l.b16 %v87
    %v158 = vunpack.c.h.b16 %v87
    %v159 = vunpack.c.l.b16 %v88
    %v160 = vunpack.c.l.b16 %v89
    %v161 = vunpack.c.h.b16 %v89
    %v162 = vunpack.c.l.b16 %v90
    %v163 = vunpack.c.l.b16 %v91
    %v164 = vunpack.c.h.b16 %v91
    %v165 = vunpack.c.l.b16 %v92
    %v166 = vunpack.c.l.b16 %v93
    %v167 = vunpack.c.h.b16 %v93
    %v168 = vunpack.c.l.b16 %v94
    %v169 = vunpack.c.l.b16 %v95
    %v170 = vunpack.c.h.b16 %v95
    %v171 = vunpack.c.l.b16 %v96
    %v172 = vunpack.c.l.b16 %v97
    %v173 = vunpack.c.h.b16 %v97
    %v174 = vunpack.c.l.b16 %v98
    %v175 = vunpack.c.l.b16 %v99
    %v176 = vunpack.c.h.b16 %v99
    %v177 = vunpack.c.l.b16 %v100
    %v178 = vunpack.c.l.b16 %v101
    %v179 = vunpack.c.h.b16 %v101
    %v180 = vunpack.c.l.b16 %v102
    %v181 = vunpack.c.l.b16 %v103
    %v182 = vunpack.c.h.b16 %v103
    %v183 = vunpack.c.l.b16 %v104
    %v184 = vunpack.c.l.b16 %v105
    %v185 = vunpack.c.h.b16 %v105
    %v186 = vunpack.c.l.b16 %v106
    %v187 = vunpack.c.l.b16 %v107
    %v188 = vunpack.c.h.b16 %v107
    %v189 = vunpack.c.l.b16 %v108
    %v190 = vunpack.c.l.b16 %v109
    %v191 = vunpack.c.h.b16 %v109
    %v192 = vunpack.c.l.b16 %v110
    %v193 = vunpack.c.l.b16 %v111
    %v194 = vunpack.c.h.b16 %v111
    %v195 = vunpack.c.l.b16 %v112
    %v196 = vunpack.c.l.b16 %v113
    %v197 = vunpack.c.h.b16 %v113
    %v198 = vunpack.c.l.b16 %v114
    %v199 = vunpack.c.l.b16 %v115
    %v200 = vunpack.c.h.b16 %v115
    %v201 = vunpack.c.l.b16 %v116
    %v202 = vunpack.c.l.b16 %v117
    %v203 = vunpack.c.h.b16 %v117
    %v204 = vunpack.c.l.b16 %v118
    %v205 = vpack.c.b16 %v160, %v157
    %v206 = vpack.c.b16 %v161, %v158
    %v207 = vpack.c.b16 %v162, %v159
    %v208 = vpack.c.b16 %v166, %v163
    %v209 = vpack.c.b16 %v167, %v164
    %v210 = vpack.c.b16 %v168, %v165
    %v211 = vpack.c.b16 %v172, %v169
    %v212 = vpack.c.b16 %v173, %v170
    %v213 = vpack.c.b16 %v174, %v171
    %v214 = vpack.c.b16 %v178, %v175
    %v215 = vpack.c.b16 %v179, %v176
    %v216 = vpack.c.b16 %v180, %v177
    %v217 = vpack.c.b16 %v184, %v181
    %v218 = vpack.c.b16 %v185, %v182
    %v219 = vpack.c.b16 %v186, %v183
    %v220 = vpack.c.b16 %v190, %v187
    %v221 = vpack.c.b16 %v191, %v188
    %v222 = vpack.c.b16 %v192, %v189
    %v223 = vpack.c.b16 %v196, %v193
    %v224 = vpack.c.b16 %v197, %v194
    %v225 = vpack.c.b16 %v198, %v195
    %v226 = vpack.c.b16 %v202, %v199
    %v227 = vpack.c.b16 %v203, %v200
    %v228 = vpack.c.b16 %v204, %v201
    %253 = vmatpush.bf16.msra.mxu0 %v226
    %254 = vmatpush.bf16.msra.mxu0 %v223
    %255 = vmatpush.bf16.msra.mxu0 %v220
    %256 = vmatpush.bf16.msra.mxu0 %v217
    %257 = vmatpush.bf16.msra.mxu0 %v214
    %258 = vmatpush.bf16.msra.mxu0 %v211
    %259 = vmatpush.bf16.msra.mxu0 %v208
    %260 = vmatpush.bf16.msra.mxu0 %v205
    %261 = vmatmul.bf16.gmra.mxu0 %v123
    %v262 = vpop.f32.mrf.mxu0
    %v263 = vadd.f32 0.0, %v262
    %v264 = vpop.f32.mrf.mxu0
    %v265 = vadd.f32 0.0, %v264
    %266 = vdwg.mxu0
    %267 = vmatpush.bf16.msra.mxu0 %v227
    %268 = vmatpush.bf16.msra.mxu0 %v224
    %269 = vmatpush.bf16.msra.mxu0 %v221
    %270 = vmatpush.bf16.msra.mxu0 %v218
    %271 = vmatpush.bf16.msra.mxu0 %v215
    %272 = vmatpush.bf16.msra.mxu0 %v212
    %273 = vmatpush.bf16.msra.mxu0 %v209
    %274 = vmatpush.bf16.msra.mxu0 %v206
    %275 = vmatmul.bf16.gmra.mxu0 %v123
    %v276 = vpop.f32.mrf.mxu0
    %v277 = vadd.f32 0.0, %v276
    %v278 = vpop.f32.mrf.mxu0
    %v279 = vadd.f32 0.0, %v278
    %280 = vdwg.mxu0
    %281 = vmatpush.bf16.msra.mxu0 %v228
    %282 = vmatpush.bf16.msra.mxu0 %v225
    %283 = vmatpush.bf16.msra.mxu0 %v222
    %284 = vmatpush.bf16.msra.mxu0 %v219
    %285 = vmatpush.bf16.msra.mxu0 %v216
    %286 = vmatpush.bf16.msra.mxu0 %v213
    %287 = vmatpush.bf16.msra.mxu0 %v210
    %288 = vmatpush.bf16.msra.mxu0 %v207
    %289 = vmatmul.bf16.gmra.mxu0 %v123
    %v290 = vpop.f32.mrf.mxu0
    %v291 = vadd.f32 0.0, %v290
    %v292 = vpop.f32.mrf.mxu0
    %v293 = vadd.f32 0.0, %v292
    %294 = vdwg.mxu0
    %v295 = vpack.c.bf16 %v263, %v263
    %v296 = vpack.c.bf16 %v265, %v265
    %v297 = vpack.c.bf16 %v277, %v277
    %v298 = vpack.c.bf16 %v279, %v279
    %vm299 = vcmask 261120
    %v301 = vsel %vm299, %v295, 0
    %v304 = vsel %vm299, %v297, 0
    %306 = vmatpush.bf16.xpose.msra.mxu0 0
    %307 = vmatpush.bf16.xpose.msra.mxu0 0
    %308 = vmatpush.bf16.xpose.msra.mxu0 0
    %309 = vmatpush.bf16.xpose.msra.mxu0 0
    %310 = vmatpush.bf16.xpose.msra.mxu0 0
    %311 = vmatpush.bf16.xpose.msra.mxu0 0
    %312 = vmatpush.bf16.xpose.msra.mxu0 0
    %313 = vmatpush.bf16.xpose.msra.mxu0 %v304
    %314 = vmatmul.bf16.gmra.mxu0 %v301
    %v315 = vpop.f32.mrf.mxu0
    %v316 = vadd.f32 0.0, %v315
    %v317 = vpop.f32.mrf.mxu0
    %318 = vdwg.mxu0
    %v320 = vsel %vm299, %v296, 0
    %v323 = vsel %vm299, %v298, 0
    %325 = vmatpush.bf16.xpose.msra.mxu0 0
    %326 = vmatpush.bf16.xpose.msra.mxu0 0
    %327 = vmatpush.bf16.xpose.msra.mxu0 0
    %328 = vmatpush.bf16.xpose.msra.mxu0 0
    %329 = vmatpush.bf16.xpose.msra.mxu0 0
    %330 = vmatpush.bf16.xpose.msra.mxu0 0
    %331 = vmatpush.bf16.xpose.msra.mxu0 0
    %332 = vmatpush.bf16.xpose.msra.mxu0 %v323
    %333 = vmatmul.bf16.gmra.mxu0 %v320
    %v334 = vpop.f32.mrf.mxu0
    %v335 = vadd.f32 0.0, %v334
    %v336 = vpop.f32.mrf.mxu0
    %337 = vdwg.mxu0
    %v339 = vunpack.c.l.b16 %v295
    %v340 = vpack.c.b16 %v339, %v339
    %341 = vrot.lane.b32.xlu0 %v340, 96
    %v342 = vpop.permute.xlu0 %341
    %v344 = vunpack.c.l.b16 %v297
    %v345 = vpack.c.b16 %v344, %v344
    %346 = vrot.lane.b32.xlu0 %v345, 96
    %v347 = vpop.permute.xlu0 %346
    %v349 = vsel %vm299, %v342, 0
    %v352 = vsel %vm299, %v347, 0
    %354 = vmatpush.bf16.xpose.msra.mxu0 0
    %355 = vmatpush.bf16.xpose.msra.mxu0 0
    %356 = vmatpush.bf16.xpose.msra.mxu0 0
    %357 = vmatpush.bf16.xpose.msra.mxu0 0
    %358 = vmatpush.bf16.xpose.msra.mxu0 0
    %359 = vmatpush.bf16.xpose.msra.mxu0 0
    %360 = vmatpush.bf16.xpose.msra.mxu0 0
    %361 = vmatpush.bf16.xpose.msra.mxu0 %v352
    %362 = vmatmul.bf16.gmra.mxu0 %v349
    %v363 = vpop.f32.mrf.mxu0
    %v364 = vadd.f32 0.0, %v363
    %v365 = vpop.f32.mrf.mxu0
    %366 = vdwg.mxu0
    %v368 = vunpack.c.l.b16 %v296
    %v369 = vpack.c.b16 %v368, %v368
    %370 = vrot.lane.b32.xlu0 %v369, 96
    %v371 = vpop.permute.xlu0 %370
    %v373 = vunpack.c.l.b16 %v298
    %v374 = vpack.c.b16 %v373, %v373
    %375 = vrot.lane.b32.xlu0 %v374, 96
    %v376 = vpop.permute.xlu0 %375
    %v378 = vsel %vm299, %v371, 0
    %v381 = vsel %vm299, %v376, 0
    %383 = vmatpush.bf16.xpose.msra.mxu0 0
    %384 = vmatpush.bf16.xpose.msra.mxu0 0
    %385 = vmatpush.bf16.xpose.msra.mxu0 0
    %386 = vmatpush.bf16.xpose.msra.mxu0 0
    %387 = vmatpush.bf16.xpose.msra.mxu0 0
    %388 = vmatpush.bf16.xpose.msra.mxu0 0
    %389 = vmatpush.bf16.xpose.msra.mxu0 0
    %390 = vmatpush.bf16.xpose.msra.mxu0 %v381
    %391 = vmatmul.bf16.gmra.mxu0 %v378
    %v392 = vpop.f32.mrf.mxu0
    %v393 = vadd.f32 0.0, %v392
    %v394 = vpop.f32.mrf.mxu0
    %395 = vdwg.mxu0
    %396 = vrot.lane.b32.xlu0 %v340, 64
    %v397 = vpop.permute.xlu0 %396
    %398 = vrot.lane.b32.xlu0 %v345, 64
    %v399 = vpop.permute.xlu0 %398
    %v401 = vsel %vm299, %v397, 0
    %v404 = vsel %vm299, %v399, 0
    %406 = vmatpush.bf16.xpose.msra.mxu0 0
    %407 = vmatpush.bf16.xpose.msra.mxu0 0
    %408 = vmatpush.bf16.xpose.msra.mxu0 0
    %409 = vmatpush.bf16.xpose.msra.mxu0 0
    %410 = vmatpush.bf16.xpose.msra.mxu0 0
    %411 = vmatpush.bf16.xpose.msra.mxu0 0
    %412 = vmatpush.bf16.xpose.msra.mxu0 0
    %413 = vmatpush.bf16.xpose.msra.mxu0 %v404
    %414 = vmatmul.bf16.gmra.mxu0 %v401
    %v415 = vpop.f32.mrf.mxu0
    %v416 = vadd.f32 0.0, %v415
    %v417 = vpop.f32.mrf.mxu0
    %418 = vdwg.mxu0
    %419 = vrot.lane.b32.xlu0 %v369, 64
    %v420 = vpop.permute.xlu0 %419
    %421 = vrot.lane.b32.xlu0 %v374, 64
    %v422 = vpop.permute.xlu0 %421
    %v424 = vsel %vm299, %v420, 0
    %v427 = vsel %vm299, %v422, 0
    %429 = vmatpush.bf16.xpose.msra.mxu0 0
    %430 = vmatpush.bf16.xpose.msra.mxu0 0
    %431 = vmatpush.bf16.xpose.msra.mxu0 0
    %432 = vmatpush.bf16.xpose.msra.mxu0 0
    %433 = vmatpush.bf16.xpose.msra.mxu0 0
    %434 = vmatpush.bf16.xpose.msra.mxu0 0
    %435 = vmatpush.bf16.xpose.msra.mxu0 0
    %436 = vmatpush.bf16.xpose.msra.mxu0 %v427
    %437 = vmatmul.bf16.gmra.mxu0 %v424
    %v438 = vpop.f32.mrf.mxu0
    %v439 = vadd.f32 0.0, %v438
    %v440 = vpop.f32.mrf.mxu0
    %441 = vdwg.mxu0
    %442 = vrot.lane.b32.xlu0 %v340, 32
    %v443 = vpop.permute.xlu0 %442
    %444 = vrot.lane.b32.xlu0 %v345, 32
    %v445 = vpop.permute.xlu0 %444
    %v447 = vsel %vm299, %v443, 0
    %v450 = vsel %vm299, %v445, 0
    %452 = vmatpush.bf16.xpose.msra.mxu0 0
    %453 = vmatpush.bf16.xpose.msra.mxu0 0
    %454 = vmatpush.bf16.xpose.msra.mxu0 0
    %455 = vmatpush.bf16.xpose.msra.mxu0 0
    %456 = vmatpush.bf16.xpose.msra.mxu0 0
    %457 = vmatpush.bf16.xpose.msra.mxu0 0
    %458 = vmatpush.bf16.xpose.msra.mxu0 0
    %459 = vmatpush.bf16.xpose.msra.mxu0 %v450
    %460 = vmatmul.bf16.gmra.mxu0 %v447
    %v461 = vpop.f32.mrf.mxu0
    %v462 = vadd.f32 0.0, %v461
    %v463 = vpop.f32.mrf.mxu0
    %464 = vdwg.mxu0
    %465 = vrot.lane.b32.xlu0 %v369, 32
    %v466 = vpop.permute.xlu0 %465
    %467 = vrot.lane.b32.xlu0 %v374, 32
    %v468 = vpop.permute.xlu0 %467
    %v470 = vsel %vm299, %v466, 0
    %v473 = vsel %vm299, %v468, 0
    %475 = vmatpush.bf16.xpose.msra.mxu0 0
    %476 = vmatpush.bf16.xpose.msra.mxu0 0
    %477 = vmatpush.bf16.xpose.msra.mxu0 0
    %478 = vmatpush.bf16.xpose.msra.mxu0 0
    %479 = vmatpush.bf16.xpose.msra.mxu0 0
    %480 = vmatpush.bf16.xpose.msra.mxu0 0
    %481 = vmatpush.bf16.xpose.msra.mxu0 0
    %482 = vmatpush.bf16.xpose.msra.mxu0 %v473
    %483 = vmatmul.bf16.gmra.mxu0 %v470
    %v484 = vpop.f32.mrf.mxu0
    %v485 = vadd.f32 0.0, %v484
    %v486 = vpop.f32.mrf.mxu0
    %487 = vdwg.mxu0
    %v488 = vmax.f32 %v316, %v364
    %v489 = vmax.f32 %v335, %v393
    %v490 = vmax.f32 %v488, %v416
    %v491 = vmax.f32 %v489, %v439
    %v492 = vmax.f32 %v490, %v462
    %v493 = vmax.f32 %v491, %v485
    %vm494 = vcmask 64512
    %v495 = vsel %vm494, %v492, -inf
    %v496 = vsel %vm494, %v493, -inf
    %v497 = vmax.f32 %v495, %v496
    %v498 = vsub.f32 %v316, %v497
    %v499 = vsub.f32 %v335, %v497
    %v500 = vmul.f32 %v498, 1.442695
    %v501 = vpow.pop %v500
    %v502 = vmul.f32 %v499, 1.442695
    %v503 = vpow.pop %v502
    %v504 = vsub.f32 %v364, %v497
    %v505 = vsub.f32 %v393, %v497
    %v506 = vmul.f32 %v504, 1.442695
    %v507 = vpow.pop %v506
    %v508 = vmul.f32 %v505, 1.442695
    %v509 = vpow.pop %v508
    %v510 = vadd.f32 %v501, %v507
    %v511 = vadd.f32 %v503, %v509
    %v512 = vsub.f32 %v416, %v497
    %v513 = vsub.f32 %v439, %v497
    %v514 = vmul.f32 %v512, 1.442695
    %v515 = vpow.pop %v514
    %v516 = vmul.f32 %v513, 1.442695
    %v517 = vpow.pop %v516
    %v518 = vadd.f32 %v510, %v515
    %v519 = vadd.f32 %v511, %v517
    %v520 = vsub.f32 %v462, %v497
    %v521 = vsub.f32 %v485, %v497
    %v522 = vmul.f32 %v520, 1.442695
    %v523 = vpow.pop %v522
    %v524 = vmul.f32 %v521, 1.442695
    %v525 = vpow.pop %v524
    %v526 = vadd.f32 %v518, %v523
    %v527 = vadd.f32 %v519, %v525
    %v528 = vsel %vm494, %v526, 0.0
    %v529 = vsel %vm494, %v527, 0.0
    %v530 = vadd.f32 %v528, %v529
    %v531 = vrcp.pop %v530
    %v532 = vld [vmem:[#allocation8] sm:$0xf]
    %v533 = vld [vmem:[#allocation8 + $0x4] sm:$0xf]
    %v534 = vld [vmem:[#allocation8 + $0x8] sm:$0xf]
    %v535 = vld [vmem:[#allocation8 + $0xc] sm:$0xf]
    %v536 = vld [vmem:[#allocation8 + $0x10] sm:$0xf]
    %v537 = vld [vmem:[#allocation8 + $0x14] sm:$0xf]
    %v538 = vld [vmem:[#allocation8 + $0x18] sm:$0xf]
    %v539 = vld [vmem:[#allocation8 + $0x1c] sm:$0xf]
    %v540 = vld [vmem:[#allocation8 + $0x20] sm:$0xf]
    %v541 = vld [vmem:[#allocation8 + $0x24] sm:$0xf]
    %v542 = vld [vmem:[#allocation8 + $0x28] sm:$0xf]
    %v543 = vld [vmem:[#allocation8 + $0x2c] sm:$0xf]
    %v544 = vld [vmem:[#allocation8 + $0x30] sm:$0xf]
    %v545 = vld [vmem:[#allocation8 + $0x34] sm:$0xf]
    %v546 = vld [vmem:[#allocation8 + $0x38] sm:$0xf]
    %v547 = vld [vmem:[#allocation8 + $0x3c] sm:$0xf]
    %v548 = vmul.f32 %v501, %v531
    %v549 = vmul.f32 %v503, %v531
    %v550 = vpack.c.bf16 %v548, %v548
    %v551 = vpack.c.bf16 %v549, %v549
    %v552 = vpack.c.bf16 %v291, %v291
    %v553 = vpack.c.bf16 %v293, %v293
    %v555 = vsel %vm494, %v550, 0
    %vm557 = vcmask 1043456
    %v559 = vsel %vm557, %v552, 0
    %561 = vmatpush.bf16.msra.mxu0 0
    %562 = vmatpush.bf16.msra.mxu0 0
    %563 = vmatpush.bf16.msra.mxu0 0
    %564 = vmatpush.bf16.msra.mxu0 0
    %565 = vmatpush.bf16.msra.mxu0 0
    %566 = vmatpush.bf16.msra.mxu0 0
    %567 = vmatpush.bf16.msra.mxu0 0
    %568 = vmatpush.bf16.msra.mxu0 %v559
    %569 = vmatmul.bf16.gmra.mxu0 %v555
    %v570 = vpop.f32.mrf.mxu0
    %v571 = vadd.f32 0.0, %v570
    %v572 = vpop.f32.mrf.mxu0
    %573 = vdwg.mxu0
    %v575 = vsel %vm494, %v551, 0
    %v578 = vsel %vm557, %v553, 0
    %580 = vmatpush.bf16.msra.mxu0 0
    %581 = vmatpush.bf16.msra.mxu0 0
    %582 = vmatpush.bf16.msra.mxu0 0
    %583 = vmatpush.bf16.msra.mxu0 0
    %584 = vmatpush.bf16.msra.mxu0 0
    %585 = vmatpush.bf16.msra.mxu0 0
    %586 = vmatpush.bf16.msra.mxu0 0
    %587 = vmatpush.bf16.msra.mxu0 %v578
    %588 = vmatmul.bf16.gmra.mxu0 %v575
    %v589 = vpop.f32.mrf.mxu0
    %v590 = vadd.f32 0.0, %v589
    %v591 = vpop.f32.mrf.mxu0
    %592 = vdwg.mxu0
    %v593 = vpack.c.bf16 %v571, %v571
    %v594 = vpack.c.bf16 %v590, %v590
    %v595 = vmul.f32 %v507, %v531
    %v596 = vmul.f32 %v509, %v531
    %v597 = vpack.c.bf16 %v595, %v595
    %v598 = vpack.c.bf16 %v596, %v596
    %v600 = vunpack.c.l.b16 %v552
    %v601 = vpack.c.b16 %v600, %v600
    %602 = vrot.lane.b32.xlu0 %v601, 96
    %v603 = vpop.permute.xlu0 %602
    %v605 = vsel %vm494, %v597, 0
    %v608 = vsel %vm557, %v603, 0
    %610 = vmatpush.bf16.msra.mxu0 0
    %611 = vmatpush.bf16.msra.mxu0 0
    %612 = vmatpush.bf16.msra.mxu0 0
    %613 = vmatpush.bf16.msra.mxu0 0
    %614 = vmatpush.bf16.msra.mxu0 0
    %615 = vmatpush.bf16.msra.mxu0 0
    %616 = vmatpush.bf16.msra.mxu0 0
    %617 = vmatpush.bf16.msra.mxu0 %v608
    %618 = vmatmul.bf16.gmra.mxu0 %v605
    %v619 = vpop.f32.mrf.mxu0
    %v620 = vadd.f32 0.0, %v619
    %v621 = vpop.f32.mrf.mxu0
    %622 = vdwg.mxu0
    %v624 = vunpack.c.l.b16 %v553
    %v625 = vpack.c.b16 %v624, %v624
    %626 = vrot.lane.b32.xlu0 %v625, 96
    %v627 = vpop.permute.xlu0 %626
    %v629 = vsel %vm494, %v598, 0
    %v632 = vsel %vm557, %v627, 0
    %634 = vmatpush.bf16.msra.mxu0 0
    %635 = vmatpush.bf16.msra.mxu0 0
    %636 = vmatpush.bf16.msra.mxu0 0
    %637 = vmatpush.bf16.msra.mxu0 0
    %638 = vmatpush.bf16.msra.mxu0 0
    %639 = vmatpush.bf16.msra.mxu0 0
    %640 = vmatpush.bf16.msra.mxu0 0
    %641 = vmatpush.bf16.msra.mxu0 %v632
    %642 = vmatmul.bf16.gmra.mxu0 %v629
    %v643 = vpop.f32.mrf.mxu0
    %v644 = vadd.f32 0.0, %v643
    %v645 = vpop.f32.mrf.mxu0
    %646 = vdwg.mxu0
    %v647 = vpack.c.bf16 %v620, %v620
    %v648 = vpack.c.bf16 %v644, %v644
    %v651 = vunpack.c.l.b16 %v647
    %v652 = vunpack.c.l.b16 %v648
    %v653 = vpack.c.b16 %v652, %v651
    %v658 = vunpack.c.l.b16 %v536
    %v659 = vunpack.c.l.b16 %v537
    %v660 = vunpack.c.l.b16 %v538
    %v661 = vunpack.c.l.b16 %v539
    %v662 = vpack.c.b16 %v659, %v658
    %v663 = vpack.c.b16 %v661, %v660
    %v667 = vsel %vm299, %v653, 0
    %669 = vmatpush.bf16.msra.mxu0 0
    %670 = vmatpush.bf16.msra.mxu0 0
    %671 = vmatpush.bf16.msra.mxu0 0
    %672 = vmatpush.bf16.msra.mxu0 0
    %673 = vmatpush.bf16.msra.mxu0 0
    %674 = vmatpush.bf16.msra.mxu0 0
    %675 = vmatpush.bf16.msra.mxu0 %v663
    %676 = vmatpush.bf16.msra.mxu0 %v662
    %677 = vmatmul.bf16.gmra.mxu0 %v667
    %v678 = vpop.f32.mrf.mxu0
    %v679 = vadd.f32 0.0, %v678
    %v680 = vpop.f32.mrf.mxu0
    %v681 = vadd.f32 0.0, %v680
    %682 = vdwg.mxu0
    %v685 = vunpack.c.l.b16 %v593
    %v686 = vunpack.c.l.b16 %v594
    %v687 = vpack.c.b16 %v686, %v685
    %v692 = vunpack.c.l.b16 %v532
    %v693 = vunpack.c.l.b16 %v533
    %v694 = vunpack.c.l.b16 %v534
    %v695 = vunpack.c.l.b16 %v535
    %v696 = vpack.c.b16 %v693, %v692
    %v697 = vpack.c.b16 %v695, %v694
    %v701 = vsel %vm299, %v687, 0
    %703 = vmatpush.bf16.msra.mxu0 0
    %704 = vmatpush.bf16.msra.mxu0 0
    %705 = vmatpush.bf16.msra.mxu0 0
    %706 = vmatpush.bf16.msra.mxu0 0
    %707 = vmatpush.bf16.msra.mxu0 0
    %708 = vmatpush.bf16.msra.mxu0 0
    %709 = vmatpush.bf16.msra.mxu0 %v697
    %710 = vmatpush.bf16.msra.mxu0 %v696
    %711 = vmatmul.bf16.gmra.mxu0 %v701
    %v712 = vpop.f32.mrf.mxu0
    %v713 = vadd.f32 %v679, %v712
    %v714 = vpop.f32.mrf.mxu0
    %v715 = vadd.f32 %v681, %v714
    %716 = vdwg.mxu0
    %v717 = vmul.f32 %v515, %v531
    %v718 = vmul.f32 %v517, %v531
    %v719 = vpack.c.bf16 %v717, %v717
    %v720 = vpack.c.bf16 %v718, %v718
    %721 = vrot.lane.b32.xlu0 %v601, 64
    %v722 = vpop.permute.xlu0 %721
    %v724 = vsel %vm494, %v719, 0
    %v727 = vsel %vm557, %v722, 0
    %729 = vmatpush.bf16.msra.mxu0 0
    %730 = vmatpush.bf16.msra.mxu0 0
    %731 = vmatpush.bf16.msra.mxu0 0
    %732 = vmatpush.bf16.msra.mxu0 0
    %733 = vmatpush.bf16.msra.mxu0 0
    %734 = vmatpush.bf16.msra.mxu0 0
    %735 = vmatpush.bf16.msra.mxu0 0
    %736 = vmatpush.bf16.msra.mxu0 %v727
    %737 = vmatmul.bf16.gmra.mxu0 %v724
    %v738 = vpop.f32.mrf.mxu0
    %v739 = vadd.f32 0.0, %v738
    %v740 = vpop.f32.mrf.mxu0
    %741 = vdwg.mxu0
    %742 = vrot.lane.b32.xlu0 %v625, 64
    %v743 = vpop.permute.xlu0 %742
    %v745 = vsel %vm494, %v720, 0
    %v748 = vsel %vm557, %v743, 0
    %750 = vmatpush.bf16.msra.mxu0 0
    %751 = vmatpush.bf16.msra.mxu0 0
    %752 = vmatpush.bf16.msra.mxu0 0
    %753 = vmatpush.bf16.msra.mxu0 0
    %754 = vmatpush.bf16.msra.mxu0 0
    %755 = vmatpush.bf16.msra.mxu0 0
    %756 = vmatpush.bf16.msra.mxu0 0
    %757 = vmatpush.bf16.msra.mxu0 %v748
    %758 = vmatmul.bf16.gmra.mxu0 %v745
    %v759 = vpop.f32.mrf.mxu0
    %v760 = vadd.f32 0.0, %v759
    %v761 = vpop.f32.mrf.mxu0
    %762 = vdwg.mxu0
    %v763 = vpack.c.bf16 %v739, %v739
    %v764 = vpack.c.bf16 %v760, %v760
    %v767 = vunpack.c.l.b16 %v763
    %v768 = vunpack.c.l.b16 %v764
    %v769 = vpack.c.b16 %v768, %v767
    %v774 = vunpack.c.l.b16 %v540
    %v775 = vunpack.c.l.b16 %v541
    %v776 = vunpack.c.l.b16 %v542
    %v777 = vunpack.c.l.b16 %v543
    %v778 = vpack.c.b16 %v775, %v774
    %v779 = vpack.c.b16 %v777, %v776
    %v783 = vsel %vm299, %v769, 0
    %785 = vmatpush.bf16.msra.mxu0 0
    %786 = vmatpush.bf16.msra.mxu0 0
    %787 = vmatpush.bf16.msra.mxu0 0
    %788 = vmatpush.bf16.msra.mxu0 0
    %789 = vmatpush.bf16.msra.mxu0 0
    %790 = vmatpush.bf16.msra.mxu0 0
    %791 = vmatpush.bf16.msra.mxu0 %v779
    %792 = vmatpush.bf16.msra.mxu0 %v778
    %793 = vmatmul.bf16.gmra.mxu0 %v783
    %v794 = vpop.f32.mrf.mxu0
    %v795 = vadd.f32 0.0, %v794
    %v796 = vpop.f32.mrf.mxu0
    %v797 = vadd.f32 0.0, %v796
    %798 = vdwg.mxu0
    %v799 = vadd.f32 %v713, %v795
    %v800 = vadd.f32 %v715, %v797
    %v801 = vmul.f32 %v523, %v531
    %v802 = vmul.f32 %v525, %v531
    %v803 = vpack.c.bf16 %v801, %v801
    %v804 = vpack.c.bf16 %v802, %v802
    %805 = vrot.lane.b32.xlu0 %v601, 32
    %v806 = vpop.permute.xlu0 %805
    %v808 = vsel %vm494, %v803, 0
    %v811 = vsel %vm557, %v806, 0
    %813 = vmatpush.bf16.msra.mxu0 0
    %814 = vmatpush.bf16.msra.mxu0 0
    %815 = vmatpush.bf16.msra.mxu0 0
    %816 = vmatpush.bf16.msra.mxu0 0
    %817 = vmatpush.bf16.msra.mxu0 0
    %818 = vmatpush.bf16.msra.mxu0 0
    %819 = vmatpush.bf16.msra.mxu0 0
    %820 = vmatpush.bf16.msra.mxu0 %v811
    %821 = vmatmul.bf16.gmra.mxu0 %v808
    %v822 = vpop.f32.mrf.mxu0
    %v823 = vadd.f32 0.0, %v822
    %v824 = vpop.f32.mrf.mxu0
    %825 = vdwg.mxu0
    %826 = vrot.lane.b32.xlu0 %v625, 32
    %v827 = vpop.permute.xlu0 %826
    %v829 = vsel %vm494, %v804, 0
    %v832 = vsel %vm557, %v827, 0
    %834 = vmatpush.bf16.msra.mxu0 0
    %835 = vmatpush.bf16.msra.mxu0 0
    %836 = vmatpush.bf16.msra.mxu0 0
    %837 = vmatpush.bf16.msra.mxu0 0
    %838 = vmatpush.bf16.msra.mxu0 0
    %839 = vmatpush.bf16.msra.mxu0 0
    %840 = vmatpush.bf16.msra.mxu0 0
    %841 = vmatpush.bf16.msra.mxu0 %v832
    %842 = vmatmul.bf16.gmra.mxu0 %v829
    %v843 = vpop.f32.mrf.mxu0
    %v844 = vadd.f32 0.0, %v843
    %v845 = vpop.f32.mrf.mxu0
    %846 = vdwg.mxu0
    %v847 = vpack.c.bf16 %v823, %v823
    %v848 = vpack.c.bf16 %v844, %v844
    %v851 = vunpack.c.l.b16 %v847
    %v852 = vunpack.c.l.b16 %v848
    %v853 = vpack.c.b16 %v852, %v851
    %v858 = vunpack.c.l.b16 %v544
    %v859 = vunpack.c.l.b16 %v545
    %v860 = vunpack.c.l.b16 %v546
    %v861 = vunpack.c.l.b16 %v547
    %v862 = vpack.c.b16 %v859, %v858
    %v863 = vpack.c.b16 %v861, %v860
    %v867 = vsel %vm299, %v853, 0
    %869 = vmatpush.bf16.msra.mxu0 0
    %870 = vmatpush.bf16.msra.mxu0 0
    %871 = vmatpush.bf16.msra.mxu0 0
    %872 = vmatpush.bf16.msra.mxu0 0
    %873 = vmatpush.bf16.msra.mxu0 0
    %874 = vmatpush.bf16.msra.mxu0 0
    %875 = vmatpush.bf16.msra.mxu0 %v863
    %876 = vmatpush.bf16.msra.mxu0 %v862
    %877 = vmatmul.bf16.gmra.mxu0 %v867
    %v878 = vpop.f32.mrf.mxu0
    %v879 = vadd.f32 0.0, %v878
    %v880 = vpop.f32.mrf.mxu0
    %v881 = vadd.f32 0.0, %v880
    %882 = vdwg.mxu0
    %v883 = vadd.f32 %v799, %v879
    %v884 = vadd.f32 %v800, %v881
    %885 = vst [vmem:[#allocation10] sm:$0xff] %v883
    %886 = vst [vmem:[#allocation10 + $0x8] sm:$0xff] %v884
    // Predicated region
    $region34: #{tpu_custom_call.1} parent=1 // pred_check
      _
    $region35: #{tpu_custom_call.1} parent=1 // pred_check_branch
      %888 = sbr.rel (0) target = $region37
    $region36: #{tpu_custom_call.1} parent=1 // pred_region
      %890 = vsyncadd [#allocation4], 0
      %s891 = sshll.u32 [#allocation10], 4
      %s892 = int_to_ptr.vmem [resolvable:$true] %s891
      %s893 = sshll.u32 %s4, 4
      %s894 = int_to_ptr.hbm [resolvable:$true] %s893
      %899 = dma.vmem_to_hbm [thread:$0]  %s892, 256, %s894, [#allocation4], 128, 128, 8
    $region37: #{tpu_custom_call.1} parent=1 // pred_fallthru
      _
    // Predicated region
    $region38: #{tpu_custom_call.1} parent=1 // pred_check
      _
    $region39: #{tpu_custom_call.1} parent=1 // pred_check_branch
      %901 = sbr.rel (0) target = $region41
    $region40: #{tpu_custom_call.1} parent=1 // pred_region
      %903 = dma.done [#allocation4], 256
    $region41: #{tpu_custom_call.1} parent=1 // pred_fallthru
      _
    %904 = vsyncpa [#allocation3], 1
    %905 = vsyncpa [#allocation6], 1
    %906 = vsyncpa [#allocation9], 1
    %907 = vsyncpa [#allocation4], 1

</llo_original>
